<compile_context>
chip_gen: v7x
topology: tpu7x:2x2x1
jax: 0.10.0
libtpu: 0.0.40
codegen_flags: <defaults>
</compile_context>

<pallas_src>
import functools

import jax
import jax.numpy as jnp
from jax.experimental import pallas as pl
from jax.experimental.pallas import tpu as pltpu


def _mish(x):
    """mish(x) = x * tanh(softplus(x)).

    tanh(softplus(x)) = ((1+e)^2 - 1) / ((1+e)^2 + 1) = e*(e+2) / (e*(e+2)+2),
    with e = exp(x).  One exp + one exact divide.  Clamping x at 20 avoids
    overflow; there tanh(softplus(x)) == 1 to f32 precision so mish(x) == x,
    which the clamped formula reproduces.
    """
    e = jnp.exp(jnp.minimum(x, 20.0))
    num = e * (e + 2.0)
    return x * (num / (num + 2.0))


def _exact_mish(x):
    return x * jnp.tanh(jax.nn.softplus(x))


def _resmlp_kernel(x_ref,
                   w0_ref, b0_ref,
                   w1_ref, b1_ref,
                   w2_ref, b2_ref,
                   w3_ref, b3_ref,
                   o_ref):
    mm_dtype = w0_ref.dtype  # matmul operand dtype (bf16 by default)

    # In-kernel cast of the native-width input tile to the matmul dtype.
    x = x_ref[...].astype(mm_dtype)

    # Input projection (bf16 MXU operands, f32 accumulation + f32 bias add).
    h = jnp.dot(x, w0_ref[...], preferred_element_type=jnp.float32) + b0_ref[...]

    # TwoLayerPreActivationResNetLinear (dropout=0 -> identity, no norm).
    r = h
    a = _mish(h).astype(mm_dtype)
    h = jnp.dot(a, w1_ref[...], preferred_element_type=jnp.float32) + b1_ref[...]
    a = _mish(h).astype(mm_dtype)
    h = jnp.dot(a, w2_ref[...], preferred_element_type=jnp.float32) + b2_ref[...]
    h = h + r

    # Output projection; store at native d_out lane width.
    y = jnp.dot(h.astype(mm_dtype), w3_ref[...],
                preferred_element_type=jnp.float32) + b3_ref[...]
    o_ref[...] = y.astype(o_ref.dtype)


def _round_up(n, m):
    return ((n + m - 1) // m) * m


def _pad2(a, rows, cols):
    return jnp.pad(a, ((0, rows - a.shape[0]), (0, cols - a.shape[1])))


def pack_params(params, matmul_dtype=jnp.bfloat16):
    """One-time prepack: pad hidden dims to multiples of 128, cast weights.

    params: 4 tuples (w, b) with w stored as [in, out] and b as [1, out].
    Padded weight rows/cols and bias lanes are exactly zero, and mish(0) == 0,
    so real output columns are bit-identical to the unpadded computation.
    Input (d_in) and output (d_out) feature dims stay at native width.
    """
    (w0, b0), (w1, b1), (w2, b2), (w3, b3) = params
    d_in, d_h = w0.shape
    d_out = w3.shape[1]
    p_h = _round_up(d_h, 128)

    f32 = jnp.float32
    packed = (
        _pad2(w0.astype(f32), d_in, p_h).astype(matmul_dtype),
        _pad2(b0.astype(f32), 1, p_h),
        _pad2(w1.astype(f32), p_h, p_h).astype(matmul_dtype),
        _pad2(b1.astype(f32), 1, p_h),
        _pad2(w2.astype(f32), p_h, p_h).astype(matmul_dtype),
        _pad2(b2.astype(f32), 1, p_h),
        _pad2(w3.astype(f32), p_h, d_out).astype(matmul_dtype),
        b3.astype(f32).reshape(1, d_out),
    )
    return jax.tree_util.tree_map(jnp.asarray, packed)


@functools.partial(jax.jit, static_argnames=("tile_b", "out_dtype"))
def residual_mlp_forward(x, packed, *, tile_b=2048, out_dtype=None):
    """x: [B, d_in]; packed: output of pack_params()."""
    w0p, b0p, w1p, b1p, w2p, b2p, w3p, b3p = packed
    B, d_in = x.shape
    assert w0p.shape[0] == d_in
    p_h = w0p.shape[1]
    d_out = w3p.shape[1]
    if out_dtype is None:
        out_dtype = x.dtype  # PyTorch module returns float32 activations.

    # Snug batch tiling: waste bounded to a few padded rows, and >= 2 grid
    # steps whenever there is enough batch to split (v7x megacore).
    ntiles = pl.cdiv(B, tile_b)
    if ntiles == 1 and B >= 16:
        ntiles = 2
    tb = _round_up(pl.cdiv(B, ntiles), 8)
    pb = tb * ntiles
    xp = x if pb == B else jnp.pad(x, ((0, pb - B), (0, 0)))

    def const_spec(rows, cols):
        # Weights/biases: same block every step -> DMA'd once, VMEM-resident.
        return pl.BlockSpec((rows, cols), lambda i: (0, 0))

    out = pl.pallas_call(
        _resmlp_kernel,
        out_shape=jax.ShapeDtypeStruct((pb, d_out), out_dtype),
        grid=(ntiles,),
        in_specs=[
            pl.BlockSpec((tb, d_in), lambda i: (i, 0)),    # x: tiled over batch
            const_spec(d_in, p_h), const_spec(1, p_h),     # W0, b0
            const_spec(p_h, p_h), const_spec(1, p_h),      # W1, b1
            const_spec(p_h, p_h), const_spec(1, p_h),      # W2, b2
            const_spec(p_h, d_out), const_spec(1, d_out),  # W3, b3
        ],
        out_specs=pl.BlockSpec((tb, d_out), lambda i: (i, 0)),
        compiler_params=pltpu.CompilerParams(
            dimension_semantics=("parallel",),
            vmem_limit_bytes=32 * 1024 * 1024),
    )(xp, w0p, b0p, w1p, b1p, w2p, b2p, w3p, b3p)

    return out if pb == B else out[:B]


def _init_linear(key, in_dim, out_dim):
    """Deterministic init mirroring nn.Linear; stored as [in, out] / [1, out]."""
    kw, kb = jax.random.split(key)
    bound = 1.0 / jnp.sqrt(in_dim)
    w = jax.random.uniform(kw, (out_dim, in_dim), jnp.float32, -bound, bound).T
    b = jax.random.uniform(kb, (1, out_dim), jnp.float32, -bound, bound)
    return w, b


def _reference_forward(x, params, matmul_dtype=jnp.bfloat16):
    """Pure-JAX reference: same dtype plan (bf16 dots, f32 math), exact mish."""
    (w0, b0), (w1, b1), (w2, b2), (w3, b3) = params

    def lin(a, w, b):
        return jnp.dot(a.astype(matmul_dtype), w.astype(matmul_dtype),
                       preferred_element_type=jnp.float32) + b

    h = lin(x.astype(jnp.float32), w0, b0)
    r = h
    h = lin(_exact_mish(h), w1, b1)
    h = lin(_exact_mish(h), w2, b2)
    h = h + r
    return lin(h, w3, b3)


if __name__ == "__main__":
    input_dim, hidden_dim, output_dim = 16, 32, 8
    batch = 8

    key = jax.random.PRNGKey(0)
    k_x, k0, k1, k2, k3 = jax.random.split(key, 5)

    x = jax.random.normal(k_x, (batch, input_dim), jnp.float32)
    params = (
        _init_linear(k0, input_dim, hidden_dim),   # layers[0]
        _init_linear(k1, hidden_dim, hidden_dim),  # residual block l1
        _init_linear(k2, hidden_dim, hidden_dim),  # residual block l2
        _init_linear(k3, hidden_dim, output_dim),  # layers[-1]
    )

    packed = pack_params(params)                   # one-time prepack
    y = residual_mlp_forward(x, packed)
    y = jax.block_until_ready(y)

    y_ref = _reference_forward(x, params)
    assert y.shape == (batch, output_dim)
    assert y.dtype == jnp.float32
    # Kernel and reference share the bf16 matmul-operand rounding; remaining
    # difference is only f32 rounding in the two mish formulations.
    assert jnp.allclose(y, y_ref, atol=5e-3, rtol=5e-3), (
        float(jnp.max(jnp.abs(y - y_ref))))

    print("KERNEL_OK")
</pallas_src>

<mosaic_0001>
module attributes {stable_mosaic.version = 11 : i64} {
  func.func @_resmlp_kernel(%arg0: i32, %arg1: memref<8x16xf32, #tpu.memory_space<vmem>>, %arg2: memref<16x128xbf16, #tpu.memory_space<vmem>>, %arg3: memref<1x128xf32, #tpu.memory_space<vmem>>, %arg4: memref<128x128xbf16, #tpu.memory_space<vmem>>, %arg5: memref<1x128xf32, #tpu.memory_space<vmem>>, %arg6: memref<128x128xbf16, #tpu.memory_space<vmem>>, %arg7: memref<1x128xf32, #tpu.memory_space<vmem>>, %arg8: memref<128x8xbf16, #tpu.memory_space<vmem>>, %arg9: memref<1x8xf32, #tpu.memory_space<vmem>>, %arg10: memref<8x8xf32, #tpu.memory_space<vmem>>) attributes {dimension_semantics = [#tpu.dimension_semantics<parallel>], iteration_bounds = array<i64: 1>, scalar_prefetch = 0 : i64, scratch_operands = 0 : i64, tpu.core_type = #tpu.core_type<tc>, window_params = [{transform_indices = @transform_0, window_bounds = array<i64: 8, 16>}, {pipeline_mode = #tpu.pipeline_mode<synchronous>, transform_indices = @transform_1, window_bounds = array<i64: 16, 128>}, {pipeline_mode = #tpu.pipeline_mode<synchronous>, transform_indices = @transform_2, window_bounds = array<i64: 1, 128>}, {pipeline_mode = #tpu.pipeline_mode<synchronous>, transform_indices = @transform_3, window_bounds = array<i64: 128, 128>}, {pipeline_mode = #tpu.pipeline_mode<synchronous>, transform_indices = @transform_4, window_bounds = array<i64: 1, 128>}, {pipeline_mode = #tpu.pipeline_mode<synchronous>, transform_indices = @transform_5, window_bounds = array<i64: 128, 128>}, {pipeline_mode = #tpu.pipeline_mode<synchronous>, transform_indices = @transform_6, window_bounds = array<i64: 1, 128>}, {pipeline_mode = #tpu.pipeline_mode<synchronous>, transform_indices = @transform_7, window_bounds = array<i64: 128, 8>}, {pipeline_mode = #tpu.pipeline_mode<synchronous>, transform_indices = @transform_8, window_bounds = array<i64: 1, 8>}, {transform_indices = @transform_9, window_bounds = array<i64: 8, 8>}]} {
    %c0 = arith.constant 0 : index
    %c0_0 = arith.constant 0 : index
    %0 = vector.load %arg1[%c0, %c0_0] : memref<8x16xf32, #tpu.memory_space<vmem>>, vector<8x16xf32>
    %1 = arith.truncf %0 : vector<8x16xf32> to vector<8x16xbf16>
    %c0_1 = arith.constant 0 : index
    %c0_2 = arith.constant 0 : index
    %2 = vector.load %arg2[%c0_1, %c0_2] : memref<16x128xbf16, #tpu.memory_space<vmem>>, vector<16x128xbf16>
    %cst = arith.constant dense<0.000000e+00> : vector<8x128xf32>
    %3 = tpu.matmul %1, %2, %cst {dimension_numbers = #tpu.dot_dimension_numbers<[1], [0], [0], [1], [0, 0, 1, 1], [], []>} : vector<8x16xbf16>, vector<16x128xbf16>, vector<8x128xf32> -> vector<8x128xf32>
    %c0_3 = arith.constant 0 : index
    %c0_4 = arith.constant 0 : index
    %4 = vector.load %arg3[%c0_3, %c0_4] : memref<1x128xf32, #tpu.memory_space<vmem>>, vector<1x128xf32>
    %5 = vector.broadcast %4 : vector<1x128xf32> to vector<8x128xf32>
    %6 = arith.addf %3, %5 : vector<8x128xf32>
    %cst_5 = arith.constant 2.000000e+01 : f32
    %7 = vector.broadcast %cst_5 : f32 to vector<8x128xf32>
    %8 = arith.minimumf %6, %7 : vector<8x128xf32>
    %9 = math.exp %8 : vector<8x128xf32>
    %cst_6 = arith.constant 2.000000e+00 : f32
    %10 = vector.broadcast %cst_6 : f32 to vector<8x128xf32>
    %11 = arith.addf %9, %10 : vector<8x128xf32>
    %12 = arith.mulf %9, %11 : vector<8x128xf32>
    %cst_7 = arith.constant 2.000000e+00 : f32
    %13 = vector.broadcast %cst_7 : f32 to vector<8x128xf32>
    %14 = arith.addf %12, %13 : vector<8x128xf32>
    %15 = arith.divf %12, %14 : vector<8x128xf32>
    %16 = arith.mulf %6, %15 : vector<8x128xf32>
    %17 = arith.truncf %16 : vector<8x128xf32> to vector<8x128xbf16>
    %c0_8 = arith.constant 0 : index
    %c0_9 = arith.constant 0 : index
    %18 = vector.load %arg4[%c0_8, %c0_9] : memref<128x128xbf16, #tpu.memory_space<vmem>>, vector<128x128xbf16>
    %cst_10 = arith.constant dense<0.000000e+00> : vector<8x128xf32>
    %19 = tpu.matmul %17, %18, %cst_10 {dimension_numbers = #tpu.dot_dimension_numbers<[1], [0], [0], [1], [0, 0, 1, 1], [], []>} : vector<8x128xbf16>, vector<128x128xbf16>, vector<8x128xf32> -> vector<8x128xf32>
    %c0_11 = arith.constant 0 : index
    %c0_12 = arith.constant 0 : index
    %20 = vector.load %arg5[%c0_11, %c0_12] : memref<1x128xf32, #tpu.memory_space<vmem>>, vector<1x128xf32>
    %21 = vector.broadcast %20 : vector<1x128xf32> to vector<8x128xf32>
    %22 = arith.addf %19, %21 : vector<8x128xf32>
    %cst_13 = arith.constant 2.000000e+01 : f32
    %23 = vector.broadcast %cst_13 : f32 to vector<8x128xf32>
    %24 = arith.minimumf %22, %23 : vector<8x128xf32>
    %25 = math.exp %24 : vector<8x128xf32>
    %cst_14 = arith.constant 2.000000e+00 : f32
    %26 = vector.broadcast %cst_14 : f32 to vector<8x128xf32>
    %27 = arith.addf %25, %26 : vector<8x128xf32>
    %28 = arith.mulf %25, %27 : vector<8x128xf32>
    %cst_15 = arith.constant 2.000000e+00 : f32
    %29 = vector.broadcast %cst_15 : f32 to vector<8x128xf32>
    %30 = arith.addf %28, %29 : vector<8x128xf32>
    %31 = arith.divf %28, %30 : vector<8x128xf32>
    %32 = arith.mulf %22, %31 : vector<8x128xf32>
    %33 = arith.truncf %32 : vector<8x128xf32> to vector<8x128xbf16>
    %c0_16 = arith.constant 0 : index
    %c0_17 = arith.constant 0 : index
    %34 = vector.load %arg6[%c0_16, %c0_17] : memref<128x128xbf16, #tpu.memory_space<vmem>>, vector<128x128xbf16>
    %cst_18 = arith.constant dense<0.000000e+00> : vector<8x128xf32>
    %35 = tpu.matmul %33, %34, %cst_18 {dimension_numbers = #tpu.dot_dimension_numbers<[1], [0], [0], [1], [0, 0, 1, 1], [], []>} : vector<8x128xbf16>, vector<128x128xbf16>, vector<8x128xf32> -> vector<8x128xf32>
    %c0_19 = arith.constant 0 : index
    %c0_20 = arith.constant 0 : index
    %36 = vector.load %arg7[%c0_19, %c0_20] : memref<1x128xf32, #tpu.memory_space<vmem>>, vector<1x128xf32>
    %37 = vector.broadcast %36 : vector<1x128xf32> to vector<8x128xf32>
    %38 = arith.addf %35, %37 : vector<8x128xf32>
    %39 = arith.addf %38, %6 : vector<8x128xf32>
    %40 = arith.truncf %39 : vector<8x128xf32> to vector<8x128xbf16>
    %c0_21 = arith.constant 0 : index
    %c0_22 = arith.constant 0 : index
    %41 = vector.load %arg8[%c0_21, %c0_22] : memref<128x8xbf16, #tpu.memory_space<vmem>>, vector<128x8xbf16>
    %cst_23 = arith.constant dense<0.000000e+00> : vector<8x8xf32>
    %42 = tpu.matmul %40, %41, %cst_23 {dimension_numbers = #tpu.dot_dimension_numbers<[1], [0], [0], [1], [0, 0, 1, 1], [], []>} : vector<8x128xbf16>, vector<128x8xbf16>, vector<8x8xf32> -> vector<8x8xf32>
    %c0_24 = arith.constant 0 : index
    %c0_25 = arith.constant 0 : index
    %43 = vector.load %arg9[%c0_24, %c0_25] : memref<1x8xf32, #tpu.memory_space<vmem>>, vector<1x8xf32>
    %44 = vector.broadcast %43 : vector<1x8xf32> to vector<8x8xf32>
    %45 = arith.addf %42, %44 : vector<8x8xf32>
    %c0_26 = arith.constant 0 : index
    %c0_27 = arith.constant 0 : index
    %46 = vector.load %arg10[%c0_26, %c0_27] : memref<8x8xf32, #tpu.memory_space<vmem>>, vector<8x8xf32>
    tpu.vector_store %arg10[%c0_26, %c0_27], %45 {strides = array<i32>} : memref<8x8xf32, #tpu.memory_space<vmem>>, vector<8x8xf32>,
    return
  }
  func.func @transform_0(%arg0: i32) -> (i32, i32) {
    %c0_i32 = arith.constant 0 : i32
    %c0_i32_0 = arith.constant 0 : i32
    return %arg0, %c0_i32 : i32, i32
  }
  func.func @transform_1(%arg0: i32) -> (i32, i32) {
    %c0_i32 = arith.constant 0 : i32
    %c0_i32_0 = arith.constant 0 : i32
    %c0_i32_1 = arith.constant 0 : i32
    return %c0_i32, %c0_i32_0 : i32, i32
  }
  func.func @transform_2(%arg0: i32) -> (i32, i32) {
    %c0_i32 = arith.constant 0 : i32
    %c0_i32_0 = arith.constant 0 : i32
    %c0_i32_1 = arith.constant 0 : i32
    return %c0_i32, %c0_i32_0 : i32, i32
  }
  func.func @transform_3(%arg0: i32) -> (i32, i32) {
    %c0_i32 = arith.constant 0 : i32
    %c0_i32_0 = arith.constant 0 : i32
    %c0_i32_1 = arith.constant 0 : i32
    return %c0_i32, %c0_i32_0 : i32, i32
  }
  func.func @transform_4(%arg0: i32) -> (i32, i32) {
    %c0_i32 = arith.constant 0 : i32
    %c0_i32_0 = arith.constant 0 : i32
    %c0_i32_1 = arith.constant 0 : i32
    return %c0_i32, %c0_i32_0 : i32, i32
  }
  func.func @transform_5(%arg0: i32) -> (i32, i32) {
    %c0_i32 = arith.constant 0 : i32
    %c0_i32_0 = arith.constant 0 : i32
    %c0_i32_1 = arith.constant 0 : i32
    return %c0_i32, %c0_i32_0 : i32, i32
  }
  func.func @transform_6(%arg0: i32) -> (i32, i32) {
    %c0_i32 = arith.constant 0 : i32
    %c0_i32_0 = arith.constant 0 : i32
    %c0_i32_1 = arith.constant 0 : i32
    return %c0_i32, %c0_i32_0 : i32, i32
  }
  func.func @transform_7(%arg0: i32) -> (i32, i32) {
    %c0_i32 = arith.constant 0 : i32
    %c0_i32_0 = arith.constant 0 : i32
    %c0_i32_1 = arith.constant 0 : i32
    return %c0_i32, %c0_i32_0 : i32, i32
  }
  func.func @transform_8(%arg0: i32) -> (i32, i32) {
    %c0_i32 = arith.constant 0 : i32
    %c0_i32_0 = arith.constant 0 : i32
    %c0_i32_1 = arith.constant 0 : i32
    return %c0_i32, %c0_i32_0 : i32, i32
  }
  func.func @transform_9(%arg0: i32) -> (i32, i32) {
    %c0_i32 = arith.constant 0 : i32
    %c0_i32_0 = arith.constant 0 : i32
    return %arg0, %c0_i32 : i32, i32
  }
}

</mosaic_0001>

<llo_original>
// kernel: residual_mlp_forward.1
$region0: #{residual_mlp_forward.1}
  #allocation0 [shape = 'u32[]', space=smem, size = 0x4, offset = 0x4, fixed_abs, tag = 'smem constant byte address 0x4 - core index']
  #allocation1 [shape = 'u32[144,128]{1,0:T(1,128)}', space=vmem, size = 0x12000, scoped, tag = 'internal scratch']
  %s0 = inlined_call_operand.vmem [shape: f32[8,16], index: 0, kind: input, shape index: {}]
  %s1 = inlined_call_operand.hbm [shape: bf16[16,128], index: 1, kind: input, shape index: {}]
  %s2 = inlined_call_operand.vmem [shape: f32[1,128], index: 2, kind: input, shape index: {}]
  %s3 = inlined_call_operand.vmem [shape: bf16[128,128], index: 3, kind: input, shape index: {}]
  %s4 = inlined_call_operand.vmem [shape: f32[1,128], index: 4, kind: input, shape index: {}]
  %s5 = inlined_call_operand.hbm [shape: bf16[128,128], index: 5, kind: input, shape index: {}]
  %s6 = inlined_call_operand.vmem [shape: f32[1,128], index: 6, kind: input, shape index: {}]
  %s7 = inlined_call_operand.vmem [shape: bf16[128,8], index: 7, kind: input, shape index: {}]
  %s8 = inlined_call_operand.vmem [shape: f32[1,8], index: 8, kind: input, shape index: {}]
  %s9 = inlined_call_operand.hbm [shape: f32[8,8], index: 9, kind: output, shape index: {}]
  %s10 = sld [smem:[#allocation0]]
  $region54: #{residual_mlp_forward.1} parent=0
    _
  %s12 = ssub.s32 1, %s10
  %s13 = scalar_select 0, %s12, %s10
  $region1: #{residual_mlp_forward.1} parent=0
    #allocation2 [shape = 'u8[4096]{0}', space=vmem, size = 0x1000, scoped, tag = 'input window, operand 1, single buffered']
    #allocation3 [shape = 's32[1]{0}', space=sflag, size = 0x4, scoped, tag = 'scoped memory for residual_mlp_forward.1']
    #allocation4 [shape = 's32[1]{0}', space=sflag, size = 0x4, scoped, tag = 'scoped memory for residual_mlp_forward.1']
    #allocation5 [shape = 'u8[32768]{0}', space=vmem, size = 0x8000, scoped, tag = 'input window, operand 5, single buffered']
    #allocation6 [shape = 's32[1]{0}', space=sflag, size = 0x4, scoped, tag = 'scoped memory for residual_mlp_forward.1']
    #allocation7 [shape = 'u8[4096]{0}', space=vmem, size = 0x1000, scoped, tag = 'output window, operand 0, single buffered']
    %14 = vsyncpa [#allocation3], 0
    %15 = vsyncpa [#allocation6], 0
    %16 = vsyncpa [#allocation4], 0
    // Predicated region
    $region2: #{residual_mlp_forward.1} parent=1 // pred_check
      _
    $region3: #{residual_mlp_forward.1} parent=1 // pred_check_branch
      %18 = sbr.rel (0) target = $region5
    $region4: #{residual_mlp_forward.1} parent=1 // pred_region
      _
    $region5: #{residual_mlp_forward.1} parent=1 // pred_fallthru
      _
    // Predicated region
    $region6: #{residual_mlp_forward.1} parent=1 // pred_check
      _
    $region7: #{residual_mlp_forward.1} parent=1 // pred_check_branch
      %20 = sbr.rel (0) target = $region9
    $region8: #{residual_mlp_forward.1} parent=1 // pred_region
      %s22 = ssub.s32 128, 128
      %23 = vsyncadd [#allocation3], %s22
      %s24 = sshll.u32 [#allocation2], 4
      %s25 = int_to_ptr.vmem [resolvable:$true] %s24
      %30 = dma.hbm_to_vmem [thread:$0]  %s1, 128, %s25, [#allocation3], 64, 64, 4
    $region9: #{residual_mlp_forward.1} parent=1 // pred_fallthru
      _
    // Predicated region
    $region10: #{residual_mlp_forward.1} parent=1 // pred_check
      _
    $region11: #{residual_mlp_forward.1} parent=1 // pred_check_branch
      %32 = sbr.rel (0) target = $region13
    $region12: #{residual_mlp_forward.1} parent=1 // pred_region
      _
    $region13: #{residual_mlp_forward.1} parent=1 // pred_fallthru
      _
    // Predicated region
    $region14: #{residual_mlp_forward.1} parent=1 // pred_check
      _
    $region15: #{residual_mlp_forward.1} parent=1 // pred_check_branch
      %34 = sbr.rel (0) target = $region17
    $region16: #{residual_mlp_forward.1} parent=1 // pred_region
      _
    $region17: #{residual_mlp_forward.1} parent=1 // pred_fallthru
      _
    // Predicated region
    $region18: #{residual_mlp_forward.1} parent=1 // pred_check
      _
    $region19: #{residual_mlp_forward.1} parent=1 // pred_check_branch
      %36 = sbr.rel (0) target = $region21
    $region20: #{residual_mlp_forward.1} parent=1 // pred_region
      _
    $region21: #{residual_mlp_forward.1} parent=1 // pred_fallthru
      _
    // Predicated region
    $region22: #{residual_mlp_forward.1} parent=1 // pred_check
      _
    $region23: #{residual_mlp_forward.1} parent=1 // pred_check_branch
      %38 = sbr.rel (0) target = $region25
    $region24: #{residual_mlp_forward.1} parent=1 // pred_region
      %s40 = ssub.s32 1024, 1024
      %41 = vsyncadd [#allocation6], %s40
      %s42 = sshll.u32 [#allocation5], 4
      %s43 = int_to_ptr.vmem [resolvable:$true] %s42
      %48 = dma.hbm_to_vmem [thread:$0]  %s5, 1024, %s43, [#allocation6], 64, 64, 4
    $region25: #{residual_mlp_forward.1} parent=1 // pred_fallthru
      _
    // Predicated region
    $region26: #{residual_mlp_forward.1} parent=1 // pred_check
      _
    $region27: #{residual_mlp_forward.1} parent=1 // pred_check_branch
      %50 = sbr.rel (0) target = $region29
    $region28: #{residual_mlp_forward.1} parent=1 // pred_region
      _
    $region29: #{residual_mlp_forward.1} parent=1 // pred_fallthru
      _
    // Predicated region
    $region30: #{residual_mlp_forward.1} parent=1 // pred_check
      _
    $region31: #{residual_mlp_forward.1} parent=1 // pred_check_branch
      %52 = sbr.rel (0) target = $region33
    $region32: #{residual_mlp_forward.1} parent=1 // pred_region
      _
    $region33: #{residual_mlp_forward.1} parent=1 // pred_fallthru
      _
    // Predicated region
    $region34: #{residual_mlp_forward.1} parent=1 // pred_check
      _
    $region35: #{residual_mlp_forward.1} parent=1 // pred_check_branch
      %54 = sbr.rel (0) target = $region37
    $region36: #{residual_mlp_forward.1} parent=1 // pred_region
      _
    $region37: #{residual_mlp_forward.1} parent=1 // pred_fallthru
      _
    // Predicated region
    $region38: #{residual_mlp_forward.1} parent=1 // pred_check
      _
    $region39: #{residual_mlp_forward.1} parent=1 // pred_check_branch
      %56 = sbr.rel (0) target = $region41
    $region40: #{residual_mlp_forward.1} parent=1 // pred_region
      %57 = dma.done [#allocation3], 128
    $region41: #{residual_mlp_forward.1} parent=1 // pred_fallthru
      _
    // Predicated region
    $region42: #{residual_mlp_forward.1} parent=1 // pred_check
      _
    $region43: #{residual_mlp_forward.1} parent=1 // pred_check_branch
      %59 = sbr.rel (0) target = $region45
    $region44: #{residual_mlp_forward.1} parent=1 // pred_region
      %60 = dma.done [#allocation6], 1024
    $region45: #{residual_mlp_forward.1} parent=1 // pred_fallthru
      _
    %v62 = vld [vmem:[%s0] sm:$0xff]
    %v63 = vpack.c.bf16 %v62, %v62
    %v64 = vld [vmem:[#allocation2] sm:$0xf]
    %v65 = vld [vmem:[#allocation2 + $0x4] sm:$0xf]
    %v66 = vld [vmem:[%s2] sm:$0x1]
    %v68 = vlaneseq
    %v69 = vshrl.u32 %v68, 7
    %v70 = vsub.s32 0, %v69
    %v71 = vrot.slane %v66, %v70
    %v75 = vunpack.c.l.b16 %v64
    %v76 = vunpack.c.l.b16 %v65
    %v77 = vpack.c.b16 %v76, %v75
    %vm79 = vcmask 130048
    %v81 = vsel %vm79, %v63, 0
    %83 = vmatprep.subr.bf16.mxu0 0
    %84 = vmatpush1.bf16.msra.mxu0 %v77
    %85 = vmatprep.subr.bf16.mxu0 0
    %86 = vmatpush1.bf16.msra.mxu0 0
    %87 = vmatprep.subr.bf16.mxu0 0
    %88 = vmatpush1.bf16.msra.mxu0 0
    %89 = vmatprep.subr.bf16.mxu0 0
    %90 = vmatpush1.bf16.msra.mxu0 0
    %91 = vmatprep.subr.bf16.mxu0 0
    %92 = vmatpush1.bf16.msra.mxu0 0
    %93 = vmatprep.subr.bf16.mxu0 0
    %94 = vmatpush1.bf16.msra.mxu0 0
    %95 = vmatprep.subr.bf16.mxu0 0
    %96 = vmatpush1.bf16.msra.mxu0 0
    %97 = vmatprep.subr.bf16.mxu0 0
    %98 = vmatpush1.bf16.msra.mxu0 0
    %99 = vmatprep.subr.bf16.mxu0 0
    %100 = vmatpush1.bf16.msra.mxu0 0
    %101 = vmatprep.subr.bf16.mxu0 0
    %102 = vmatpush1.bf16.msra.mxu0 0
    %103 = vmatprep.subr.bf16.mxu0 0
    %104 = vmatpush1.bf16.msra.mxu0 0
    %105 = vmatprep.subr.bf16.mxu0 0
    %106 = vmatpush1.bf16.msra.mxu0 0
    %107 = vmatprep.subr.bf16.mxu0 0
    %108 = vmatpush1.bf16.msra.mxu0 0
    %109 = vmatprep.subr.bf16.mxu0 0
    %110 = vmatpush1.bf16.msra.mxu0 0
    %111 = vmatprep.subr.bf16.mxu0 0
    %112 = vmatpush1.bf16.msra.mxu0 0
    %113 = vmatprep.subr.bf16.mxu0 0
    %114 = vmatpush1.bf16.msra.mxu0 0
    %115 = vmatprep.mubr.bf16.mxu0 0
    %116 = vmatmul.mubr.bf16.gmra.mrb[0].mxu0 %v81
    %v117 = vpop.f32.mrb[0].mxu0
    %v118 = vadd.f32 %v71, %v117
    %v119 = vpop.f32.mrb[0].mxu0
    %v120 = vpop.f32.mrb[0].mxu0
    %v121 = vpop.f32.mrb[0].mxu0
    %122 = vdwg.mxu0
    %v123 = vmin.f32 %v118, 20.0
    %v124 = vmul.f32 %v123, 1.442695
    %v125 = vpow.pop %v124
    %v126 = vadd.f32 %v125, 2.0
    %v127 = vmul.f32 %v125, %v126
    %v128 = vadd.f32 %v127, 2.0
    %v129 = vrcp.pop %v128
    %v130 = vmul.f32 %v127, %v129
    %v131 = vmul.f32 %v118, %v130
    %v132 = vpack.c.bf16 %v131, %v131
    %v133 = vld [vmem:[%s3] sm:$0xf]
    %v134 = vld [vmem:[%s3 + $0x4] sm:$0xf]
    %v135 = vld [vmem:[%s3 + $0x8] sm:$0xf]
    %v136 = vld [vmem:[%s3 + $0xc] sm:$0xf]
    %v137 = vld [vmem:[%s3 + $0x10] sm:$0xf]
    %v138 = vld [vmem:[%s3 + $0x14] sm:$0xf]
    %v139 = vld [vmem:[%s3 + $0x18] sm:$0xf]
    %v140 = vld [vmem:[%s3 + $0x1c] sm:$0xf]
    %v141 = vld [vmem:[%s3 + $0x20] sm:$0xf]
    %v142 = vld [vmem:[%s3 + $0x24] sm:$0xf]
    %v143 = vld [vmem:[%s3 + $0x28] sm:$0xf]
    %v144 = vld [vmem:[%s3 + $0x2c] sm:$0xf]
    %v145 = vld [vmem:[%s3 + $0x30] sm:$0xf]
    %v146 = vld [vmem:[%s3 + $0x34] sm:$0xf]
    %v147 = vld [vmem:[%s3 + $0x38] sm:$0xf]
    %v148 = vld [vmem:[%s3 + $0x3c] sm:$0xf]
    %v149 = vld [vmem:[%s4] sm:$0x1]
    %v151 = vlaneseq
    %v152 = vshrl.u32 %v151, 7
    %v153 = vsub.s32 0, %v152
    %v154 = vrot.slane %v149, %v153
    %v172 = vunpack.c.l.b16 %v133
    %v173 = vunpack.c.l.b16 %v134
    %v174 = vunpack.c.l.b16 %v135
    %v175 = vunpack.c.l.b16 %v136
    %v176 = vunpack.c.l.b16 %v137
    %v177 = vunpack.c.l.b16 %v138
    %v178 = vunpack.c.l.b16 %v139
    %v179 = vunpack.c.l.b16 %v140
    %v180 = vunpack.c.l.b16 %v141
    %v181 = vunpack.c.l.b16 %v142
    %v182 = vunpack.c.l.b16 %v143
    %v183 = vunpack.c.l.b16 %v144
    %v184 = vunpack.c.l.b16 %v145
    %v185 = vunpack.c.l.b16 %v146
    %v186 = vunpack.c.l.b16 %v147
    %v187 = vunpack.c.l.b16 %v148
    %v188 = vpack.c.b16 %v173, %v172
    %v189 = vpack.c.b16 %v175, %v174
    %v190 = vpack.c.b16 %v177, %v176
    %v191 = vpack.c.b16 %v179, %v178
    %v192 = vpack.c.b16 %v181, %v180
    %v193 = vpack.c.b16 %v183, %v182
    %v194 = vpack.c.b16 %v185, %v184
    %v195 = vpack.c.b16 %v187, %v186
    %204 = vmatprep.subr.bf16.mxu0 0
    %205 = vmatpush1.bf16.msra.mxu0 %v188
    %206 = vmatprep.subr.bf16.mxu0 0
    %207 = vmatpush1.bf16.msra.mxu0 %v189
    %208 = vmatprep.subr.bf16.mxu0 0
    %209 = vmatpush1.bf16.msra.mxu0 %v190
    %210 = vmatprep.subr.bf16.mxu0 0
    %211 = vmatpush1.bf16.msra.mxu0 %v191
    %212 = vmatprep.subr.bf16.mxu0 0
    %213 = vmatpush1.bf16.msra.mxu0 %v192
    %214 = vmatprep.subr.bf16.mxu0 0
    %215 = vmatpush1.bf16.msra.mxu0 %v193
    %216 = vmatprep.subr.bf16.mxu0 0
    %217 = vmatpush1.bf16.msra.mxu0 %v194
    %218 = vmatprep.subr.bf16.mxu0 0
    %219 = vmatpush1.bf16.msra.mxu0 %v195
    %220 = vmatprep.subr.bf16.mxu0 0
    %221 = vmatpush1.bf16.msra.mxu0 0
    %222 = vmatprep.subr.bf16.mxu0 0
    %223 = vmatpush1.bf16.msra.mxu0 0
    %224 = vmatprep.subr.bf16.mxu0 0
    %225 = vmatpush1.bf16.msra.mxu0 0
    %226 = vmatprep.subr.bf16.mxu0 0
    %227 = vmatpush1.bf16.msra.mxu0 0
    %228 = vmatprep.subr.bf16.mxu0 0
    %229 = vmatpush1.bf16.msra.mxu0 0
    %230 = vmatprep.subr.bf16.mxu0 0
    %231 = vmatpush1.bf16.msra.mxu0 0
    %232 = vmatprep.subr.bf16.mxu0 0
    %233 = vmatpush1.bf16.msra.mxu0 0
    %234 = vmatprep.subr.bf16.mxu0 0
    %235 = vmatpush1.bf16.msra.mxu0 0
    %236 = vmatprep.mubr.bf16.mxu0 0
    %237 = vmatmul.mubr.bf16.gmra.mrb[0].mxu0 %v132
    %v238 = vpop.f32.mrb[0].mxu0
    %v239 = vadd.f32 %v154, %v238
    %v240 = vpop.f32.mrb[0].mxu0
    %v241 = vpop.f32.mrb[0].mxu0
    %v242 = vpop.f32.mrb[0].mxu0
    %243 = vdwg.mxu0
    %v244 = vmin.f32 %v239, 20.0
    %v245 = vmul.f32 %v244, 1.442695
    %v246 = vpow.pop %v245
    %v247 = vadd.f32 %v246, 2.0
    %v248 = vmul.f32 %v246, %v247
    %v249 = vadd.f32 %v248, 2.0
    %v250 = vrcp.pop %v249
    %v251 = vmul.f32 %v248, %v250
    %v252 = vmul.f32 %v239, %v251
    %v253 = vpack.c.bf16 %v252, %v252
    %v254 = vld [vmem:[#allocation5] sm:$0xf]
    %v255 = vld [vmem:[#allocation5 + $0x4] sm:$0xf]
    %v256 = vld [vmem:[#allocation5 + $0x8] sm:$0xf]
    %v257 = vld [vmem:[#allocation5 + $0xc] sm:$0xf]
    %v258 = vld [vmem:[#allocation5 + $0x10] sm:$0xf]
    %v259 = vld [vmem:[#allocation5 + $0x14] sm:$0xf]
    %v260 = vld [vmem:[#allocation5 + $0x18] sm:$0xf]
    %v261 = vld [vmem:[#allocation5 + $0x1c] sm:$0xf]
    %v262 = vld [vmem:[#allocation5 + $0x20] sm:$0xf]
    %v263 = vld [vmem:[#allocation5 + $0x24] sm:$0xf]
    %v264 = vld [vmem:[#allocation5 + $0x28] sm:$0xf]
    %v265 = vld [vmem:[#allocation5 + $0x2c] sm:$0xf]
    %v266 = vld [vmem:[#allocation5 + $0x30] sm:$0xf]
    %v267 = vld [vmem:[#allocation5 + $0x34] sm:$0xf]
    %v268 = vld [vmem:[#allocation5 + $0x38] sm:$0xf]
    %v269 = vld [vmem:[#allocation5 + $0x3c] sm:$0xf]
    %v270 = vld [vmem:[%s6] sm:$0x1]
    %v272 = vlaneseq
    %v273 = vshrl.u32 %v272, 7
    %v274 = vsub.s32 0, %v273
    %v275 = vrot.slane %v270, %v274
    %v293 = vunpack.c.l.b16 %v254
    %v294 = vunpack.c.l.b16 %v255
    %v295 = vunpack.c.l.b16 %v256
    %v296 = vunpack.c.l.b16 %v257
    %v297 = vunpack.c.l.b16 %v258
    %v298 = vunpack.c.l.b16 %v259
    %v299 = vunpack.c.l.b16 %v260
    %v300 = vunpack.c.l.b16 %v261
    %v301 = vunpack.c.l.b16 %v262
    %v302 = vunpack.c.l.b16 %v263
    %v303 = vunpack.c.l.b16 %v264
    %v304 = vunpack.c.l.b16 %v265
    %v305 = vunpack.c.l.b16 %v266
    %v306 = vunpack.c.l.b16 %v267
    %v307 = vunpack.c.l.b16 %v268
    %v308 = vunpack.c.l.b16 %v269
    %v309 = vpack.c.b16 %v294, %v293
    %v310 = vpack.c.b16 %v296, %v295
    %v311 = vpack.c.b16 %v298, %v297
    %v312 = vpack.c.b16 %v300, %v299
    %v313 = vpack.c.b16 %v302, %v301
    %v314 = vpack.c.b16 %v304, %v303
    %v315 = vpack.c.b16 %v306, %v305
    %v316 = vpack.c.b16 %v308, %v307
    %325 = vmatprep.subr.bf16.mxu0 0
    %326 = vmatpush1.bf16.msra.mxu0 %v309
    %327 = vmatprep.subr.bf16.mxu0 0
    %328 = vmatpush1.bf16.msra.mxu0 %v310
    %329 = vmatprep.subr.bf16.mxu0 0
    %330 = vmatpush1.bf16.msra.mxu0 %v311
    %331 = vmatprep.subr.bf16.mxu0 0
    %332 = vmatpush1.bf16.msra.mxu0 %v312
    %333 = vmatprep.subr.bf16.mxu0 0
    %334 = vmatpush1.bf16.msra.mxu0 %v313
    %335 = vmatprep.subr.bf16.mxu0 0
    %336 = vmatpush1.bf16.msra.mxu0 %v314
    %337 = vmatprep.subr.bf16.mxu0 0
    %338 = vmatpush1.bf16.msra.mxu0 %v315
    %339 = vmatprep.subr.bf16.mxu0 0
    %340 = vmatpush1.bf16.msra.mxu0 %v316
    %341 = vmatprep.subr.bf16.mxu0 0
    %342 = vmatpush1.bf16.msra.mxu0 0
    %343 = vmatprep.subr.bf16.mxu0 0
    %344 = vmatpush1.bf16.msra.mxu0 0
    %345 = vmatprep.subr.bf16.mxu0 0
    %346 = vmatpush1.bf16.msra.mxu0 0
    %347 = vmatprep.subr.bf16.mxu0 0
    %348 = vmatpush1.bf16.msra.mxu0 0
    %349 = vmatprep.subr.bf16.mxu0 0
    %350 = vmatpush1.bf16.msra.mxu0 0
    %351 = vmatprep.subr.bf16.mxu0 0
    %352 = vmatpush1.bf16.msra.mxu0 0
    %353 = vmatprep.subr.bf16.mxu0 0
    %354 = vmatpush1.bf16.msra.mxu0 0
    %355 = vmatprep.subr.bf16.mxu0 0
    %356 = vmatpush1.bf16.msra.mxu0 0
    %357 = vmatprep.mubr.bf16.mxu0 0
    %358 = vmatmul.mubr.bf16.gmra.mrb[0].mxu0 %v253
    %v359 = vpop.f32.mrb[0].mxu0
    %v360 = vadd.f32 %v275, %v359
    %v361 = vpop.f32.mrb[0].mxu0
    %v362 = vpop.f32.mrb[0].mxu0
    %v363 = vpop.f32.mrb[0].mxu0
    %364 = vdwg.mxu0
    %v365 = vadd.f32 %v360, %v118
    %v366 = vpack.c.bf16 %v365, %v365
    %v367 = vld [vmem:[%s7] sm:$0xf]
    %v368 = vld [vmem:[%s7 + $0x4] sm:$0xf]
    %v369 = vld [vmem:[%s7 + $0x8] sm:$0xf]
    %v370 = vld [vmem:[%s7 + $0xc] sm:$0xf]
    %v371 = vld [vmem:[%s7 + $0x10] sm:$0xf]
    %v372 = vld [vmem:[%s7 + $0x14] sm:$0xf]
    %v373 = vld [vmem:[%s7 + $0x18] sm:$0xf]
    %v374 = vld [vmem:[%s7 + $0x1c] sm:$0xf]
    %v375 = vld [vmem:[%s7 + $0x20] sm:$0xf]
    %v376 = vld [vmem:[%s7 + $0x24] sm:$0xf]
    %v377 = vld [vmem:[%s7 + $0x28] sm:$0xf]
    %v378 = vld [vmem:[%s7 + $0x2c] sm:$0xf]
    %v379 = vld [vmem:[%s7 + $0x30] sm:$0xf]
    %v380 = vld [vmem:[%s7 + $0x34] sm:$0xf]
    %v381 = vld [vmem:[%s7 + $0x38] sm:$0xf]
    %v382 = vld [vmem:[%s7 + $0x3c] sm:$0xf]
    %v383 = vld [vmem:[%s8] sm:$0x1]
    %v385 = vlaneseq
    %v386 = vshrl.u32 %v385, 7
    %v387 = vsub.s32 0, %v386
    %v388 = vrot.slane %v383, %v387
    %v406 = vunpack.c.l.b16 %v367
    %v407 = vunpack.c.l.b16 %v368
    %v408 = vunpack.c.l.b16 %v369
    %v409 = vunpack.c.l.b16 %v370
    %v410 = vunpack.c.l.b16 %v371
    %v411 = vunpack.c.l.b16 %v372
    %v412 = vunpack.c.l.b16 %v373
    %v413 = vunpack.c.l.b16 %v374
    %v414 = vunpack.c.l.b16 %v375
    %v415 = vunpack.c.l.b16 %v376
    %v416 = vunpack.c.l.b16 %v377
    %v417 = vunpack.c.l.b16 %v378
    %v418 = vunpack.c.l.b16 %v379
    %v419 = vunpack.c.l.b16 %v380
    %v420 = vunpack.c.l.b16 %v381
    %v421 = vunpack.c.l.b16 %v382
    %v422 = vpack.c.b16 %v407, %v406
    %v423 = vpack.c.b16 %v409, %v408
    %v424 = vpack.c.b16 %v411, %v410
    %v425 = vpack.c.b16 %v413, %v412
    %v426 = vpack.c.b16 %v415, %v414
    %v427 = vpack.c.b16 %v417, %v416
    %v428 = vpack.c.b16 %v419, %v418
    %v429 = vpack.c.b16 %v421, %v420
    %438 = vmatprep.subr.bf16.mxu0 0
    %439 = vmatpush1.bf16.msra.mxu0 %v422
    %440 = vmatprep.subr.bf16.mxu0 0
    %441 = vmatpush1.bf16.msra.mxu0 %v423
    %442 = vmatprep.subr.bf16.mxu0 0
    %443 = vmatpush1.bf16.msra.mxu0 %v424
    %444 = vmatprep.subr.bf16.mxu0 0
    %445 = vmatpush1.bf16.msra.mxu0 %v425
    %446 = vmatprep.subr.bf16.mxu0 0
    %447 = vmatpush1.bf16.msra.mxu0 %v426
    %448 = vmatprep.subr.bf16.mxu0 0
    %449 = vmatpush1.bf16.msra.mxu0 %v427
    %450 = vmatprep.subr.bf16.mxu0 0
    %451 = vmatpush1.bf16.msra.mxu0 %v428
    %452 = vmatprep.subr.bf16.mxu0 0
    %453 = vmatpush1.bf16.msra.mxu0 %v429
    %454 = vmatprep.subr.bf16.mxu0 0
    %455 = vmatpush1.bf16.msra.mxu0 0
    %456 = vmatprep.subr.bf16.mxu0 0
    %457 = vmatpush1.bf16.msra.mxu0 0
    %458 = vmatprep.subr.bf16.mxu0 0
    %459 = vmatpush1.bf16.msra.mxu0 0
    %460 = vmatprep.subr.bf16.mxu0 0
    %461 = vmatpush1.bf16.msra.mxu0 0
    %462 = vmatprep.subr.bf16.mxu0 0
    %463 = vmatpush1.bf16.msra.mxu0 0
    %464 = vmatprep.subr.bf16.mxu0 0
    %465 = vmatpush1.bf16.msra.mxu0 0
    %466 = vmatprep.subr.bf16.mxu0 0
    %467 = vmatpush1.bf16.msra.mxu0 0
    %468 = vmatprep.subr.bf16.mxu0 0
    %469 = vmatpush1.bf16.msra.mxu0 0
    %470 = vmatprep.mubr.bf16.mxu0 0
    %471 = vmatmul.mubr.bf16.gmra.mrb[0].mxu0 %v366
    %v472 = vpop.f32.mrb[0].mxu0
    %v473 = vadd.f32 %v388, %v472
    %v474 = vpop.f32.mrb[0].mxu0
    %v475 = vpop.f32.mrb[0].mxu0
    %v476 = vpop.f32.mrb[0].mxu0
    %477 = vdwg.mxu0
    %vm478 = vcmask 64512
    %479 = vst.msk [vmem:[#allocation7] sm:$0xff] %vm478, %v473
    // Predicated region
    $region46: #{residual_mlp_forward.1} parent=1 // pred_check
      _
    $region47: #{residual_mlp_forward.1} parent=1 // pred_check_branch
      %481 = sbr.rel (0) target = $region49
    $region48: #{residual_mlp_forward.1} parent=1 // pred_region
      %s483 = ssub.s32 128, 128
      %484 = vsyncadd [#allocation4], %s483
      %s486 = sshll.u32 [#allocation7], 4
      %s487 = int_to_ptr.vmem [resolvable:$true] %s486
      %489 = dma.vmem_to_hbm [thread:$0]  %s487, 128, %s9, [#allocation4]
    $region49: #{residual_mlp_forward.1} parent=1 // pred_fallthru
      _
    // Predicated region
    $region50: #{residual_mlp_forward.1} parent=1 // pred_check
      _
    $region51: #{residual_mlp_forward.1} parent=1 // pred_check_branch
      %491 = sbr.rel (0) target = $region53
    $region52: #{residual_mlp_forward.1} parent=1 // pred_region
      %492 = dma.done [#allocation4], 128
    $region53: #{residual_mlp_forward.1} parent=1 // pred_fallthru
      _
    %493 = vsyncpa [#allocation3], 1
    %494 = vsyncpa [#allocation6], 1
    %495 = vsyncpa [#allocation4], 1

</llo_original>
